<compile_context>
chip_gen: v7x
topology: tpu7x:2x2x1
jax: 0.10.0
libtpu: 0.0.40
codegen_flags: <defaults>
</compile_context>

<pallas_src>
import functools

import jax
import jax.numpy as jnp
from jax import lax
from jax.experimental import pallas as pl
from jax.experimental.pallas import tpu as pltpu

IGNORE_INDEX = 255.0   # module default ignore_index
LANES = 128            # TPU lane width (last dim of the flattened slab)
CHUNK_ROWS = 256       # inner-loop slice: 256x128 f32 = 128 KiB of live values
TILE_ROWS = 2048       # HBM block per grid step on the tiled path (1 MiB/input/buffer)


def _chunk_partials(x_raw, y_raw, extra_mask, ignore):
    """Masked, numerically stable BCE-with-logits for one chunk.

    Returns (bce contributions, valid mask as f32), both (rows, LANES) f32.
    Casting to f32 happens here, per chunk, so HBM-side dtypes stay narrow.
    """
    x = x_raw.astype(jnp.float32)
    y = y_raw.astype(jnp.float32)
    valid = y != ignore
    if extra_mask is not None:           # static Python branch
        valid = valid & extra_mask
    yv = jnp.where(valid, y, 0.0)        # mask label BEFORE use (garbage-safe)
    bce = jnp.maximum(x, 0.0) - x * yv + jnp.log1p(jnp.exp(-jnp.abs(x)))
    return jnp.where(valid, bce, 0.0), valid.astype(jnp.float32)


def _focal_epilogue(bce_sum, valid_cnt, alpha, gamma):
    """loss = -(1-pt)**gamma * alpha * logpt, elementwise on any shape.

    NOTE: an all-ignored input gives NaN (0/0), matching the PyTorch reference.
    """
    bce_mean = bce_sum / valid_cnt
    logpt = -bce_mean
    pt = jnp.exp(logpt)
    one_m = 1.0 - pt
    mod = one_m * one_m if gamma == 2 else one_m ** gamma
    return -mod * alpha * logpt


# ----------------------------------------------------------------------------
# Path A: whole slab (M <= TILE_ROWS rows) in VMEM, one invocation, fused epilogue.
# ----------------------------------------------------------------------------
def _focal_single_kernel(preds_ref, labels_ref, out_ref, *,
                         n_full, tail, alpha, gamma, ignore):
    zero = jnp.zeros((1, LANES), jnp.float32)

    def accumulate(s, c, x_raw, y_raw):
        bce, vf = _chunk_partials(x_raw, y_raw, None, ignore)
        return (s + jnp.sum(bce, axis=0, keepdims=True),
                c + jnp.sum(vf, axis=0, keepdims=True))

    s_vec, c_vec = zero, zero
    if n_full:  # static: full 256-row chunks, bounded live ranges
        def body(j, carry):
            start = pl.multiple_of(j * CHUNK_ROWS, CHUNK_ROWS)
            return accumulate(*carry,
                              preds_ref[pl.ds(start, CHUNK_ROWS), :],
                              labels_ref[pl.ds(start, CHUNK_ROWS), :])
        s_vec, c_vec = lax.fori_loop(0, n_full, body, (s_vec, c_vec))
    if tail:    # static: ragged tail chunk (< 256 rows)
        t0 = n_full * CHUNK_ROWS
        s_vec, c_vec = accumulate(s_vec, c_vec,
                                  preds_ref[pl.ds(t0, tail), :],
                                  labels_ref[pl.ds(t0, tail), :])

    s11 = jnp.sum(s_vec, axis=1, keepdims=True)
    c11 = jnp.sum(c_vec, axis=1, keepdims=True)
    out_ref[...] = _focal_epilogue(s11, c11, alpha, gamma)


# ----------------------------------------------------------------------------
# Path B: parallel grid of (TILE_ROWS, 128) tiles, each emitting (8,128) partials.
# ----------------------------------------------------------------------------
def _focal_tiled_kernel(preds_ref, labels_ref, sum_ref, cnt_ref, *,
                        n_chunks, num_rows, ignore):
    i = pl.program_id(0)
    tile_base = i * TILE_ROWS

    def body(j, carry):
        s, c = carry
        start = pl.multiple_of(j * CHUNK_ROWS, CHUNK_ROWS)
        x_raw = preds_ref[pl.ds(start, CHUNK_ROWS), :]
        y_raw = labels_ref[pl.ds(start, CHUNK_ROWS), :]
        # Mask rows past the real array (ragged last tile): garbage rows in the
        # partially-filled VMEM block contribute 0 to both sum and count.
        rows = (lax.broadcasted_iota(jnp.int32, (CHUNK_ROWS, LANES), 0)
                + tile_base + start)
        bce, vf = _chunk_partials(x_raw, y_raw, rows < num_rows, ignore)
        # Fold (256,128) -> (8,128) with VPU adds only (no cross-lane work).
        s = s + bce.reshape(CHUNK_ROWS // 8, 8, LANES).sum(axis=0)
        c = c + vf.reshape(CHUNK_ROWS // 8, 8, LANES).sum(axis=0)
        return s, c

    zero = jnp.zeros((8, LANES), jnp.float32)
    s, c = lax.fori_loop(0, n_chunks, body, (zero, zero))
    sum_ref[...] = s[None]   # aligned (1,8,128) lane-dense store
    cnt_ref[...] = c[None]


# ----------------------------------------------------------------------------
# Wrapper
# ----------------------------------------------------------------------------
def focal_loss(preds, labels, alpha=0.25, gamma=2.0, ignore_index=IGNORE_INDEX):
    """JAX/Pallas equivalent of FocalLoss(alpha, gamma, weight=None, ignore_index)."""
    assert preds.shape == labels.shape
    total = preds.size

    if total % LANES == 0:
        # Zero-copy reshape, native dtypes: no wrapper-side pad or cast passes.
        M = total // LANES
        p2 = preds.reshape(M, LANES)
        l2 = labels.reshape(M, LANES)
    else:
        # TODO(synk): rare lane-unaligned sizes still pay one XLA pad copy; a
        # manual-DMA path over the flat array could avoid it.
        pad = LANES - total % LANES
        M = (total + pad) // LANES
        p2 = jnp.pad(preds.reshape(-1), (0, pad)).reshape(M, LANES)
        l2 = jnp.pad(labels.reshape(-1), (0, pad),
                     constant_values=ignore_index).reshape(M, LANES)

    if M <= TILE_ROWS:
        # Single grid step: no pipeline plumbing, fully fused focal epilogue.
        n_full, tail = divmod(M, CHUNK_ROWS)
        out = pl.pallas_call(
            functools.partial(_focal_single_kernel, n_full=n_full, tail=tail,
                              alpha=alpha, gamma=gamma, ignore=ignore_index),
            out_shape=jax.ShapeDtypeStruct((1, 1), jnp.float32),
            in_specs=[pl.BlockSpec(memory_space=pltpu.MemorySpace.VMEM),
                      pl.BlockSpec(memory_space=pltpu.MemorySpace.VMEM)],
            out_specs=pl.BlockSpec(memory_space=pltpu.MemorySpace.VMEM),
        )(p2, l2)
        return out[0, 0]

    # Tiled, fully parallel partial-sum grid (uses both TensorCores on v7x).
    num_tiles = pl.cdiv(M, TILE_ROWS)
    sums, cnts = pl.pallas_call(
        functools.partial(_focal_tiled_kernel,
                          n_chunks=TILE_ROWS // CHUNK_ROWS,
                          num_rows=M, ignore=ignore_index),
        out_shape=(jax.ShapeDtypeStruct((num_tiles, 8, LANES), jnp.float32),
                   jax.ShapeDtypeStruct((num_tiles, 8, LANES), jnp.float32)),
        grid=(num_tiles,),
        in_specs=[pl.BlockSpec((TILE_ROWS, LANES), lambda i: (i, 0)),
                  pl.BlockSpec((TILE_ROWS, LANES), lambda i: (i, 0))],
        out_specs=(pl.BlockSpec((1, 8, LANES), lambda i: (i, 0, 0)),
                   pl.BlockSpec((1, 8, LANES), lambda i: (i, 0, 0))),
        compiler_params=pltpu.CompilerParams(
            dimension_semantics=("parallel",)),
    )(p2, l2)
    # Tiny cross-tile combine (num_tiles * 1 KiB per output) + focal epilogue.
    return _focal_epilogue(jnp.sum(sums), jnp.sum(cnts), alpha, gamma)


def focal_loss_ref(preds, labels, alpha=0.25, gamma=2.0):
    """Pure-JAX reference for sanity checking."""
    mask = labels != IGNORE_INDEX
    x = preds.astype(jnp.float32)
    y = jnp.where(mask, labels.astype(jnp.float32), 0.0)
    bce = jnp.maximum(x, 0.0) - x * y + jnp.log1p(jnp.exp(-jnp.abs(x)))
    bce = jnp.where(mask, bce, 0.0)
    bce_mean = jnp.sum(bce) / jnp.sum(mask.astype(jnp.float32))
    logpt = -bce_mean
    pt = jnp.exp(logpt)
    return -((1.0 - pt) ** gamma) * alpha * logpt


if __name__ == "__main__":
    key = jax.random.PRNGKey(0)
    k_preds, k_labels, k_ignore, k_big = jax.random.split(key, 4)

    # Primary small test, matching the module's typical (N, C, H, W) usage.
    N, C, H, W = 2, 4, 16, 16
    preds = jax.random.normal(k_preds, (N, C, H, W), dtype=jnp.float32)
    labels = jax.random.bernoulli(k_labels, 0.5, (N, C, H, W)).astype(jnp.float32)
    ignore_mask = jax.random.uniform(k_ignore, (N, C, H, W)) < 0.1
    labels = jnp.where(ignore_mask, jnp.float32(IGNORE_INDEX), labels)

    loss = jax.block_until_ready(focal_loss(preds, labels))
    ref = focal_loss_ref(preds, labels)
    assert jnp.allclose(loss, ref, rtol=1e-5, atol=1e-6), (loss, ref)

    # bf16 preds: no wrapper-side cast, kernel casts per chunk in VMEM.
    loss_bf16 = jax.block_until_ready(focal_loss(preds.astype(jnp.bfloat16), labels))
    ref_bf16 = focal_loss_ref(preds.astype(jnp.bfloat16).astype(jnp.float32), labels)
    assert jnp.allclose(loss_bf16, ref_bf16, rtol=1e-5, atol=1e-6), (loss_bf16, ref_bf16)

    # Larger shape exercising the parallel tiled path + ragged-tail row masking
    # (409600 elems -> 3200 rows -> 2 tiles of 2048 rows, last tile partial).
    N2, C2, H2, W2 = 2, 8, 160, 160
    preds2 = jax.random.normal(k_big, (N2, C2, H2, W2), dtype=jnp.float32)
    labels2 = jax.random.bernoulli(k_labels, 0.5, (N2, C2, H2, W2)).astype(jnp.float32)
    ignore2 = jax.random.uniform(k_ignore, (N2, C2, H2, W2)) < 0.1
    labels2 = jnp.where(ignore2, jnp.float32(IGNORE_INDEX), labels2)

    loss2 = jax.block_until_ready(focal_loss(preds2, labels2))
    ref2 = focal_loss_ref(preds2, labels2)
    assert jnp.allclose(loss2, ref2, rtol=1e-4, atol=1e-6), (loss2, ref2)

    print("KERNEL_OK")
</pallas_src>

<mosaic_0001>
module attributes {stable_mosaic.version = 11 : i64} {
  func.func @_focal_single_kernel(%arg0: memref<16x128xf32, #tpu.memory_space<vmem>>, %arg1: memref<16x128xf32, #tpu.memory_space<vmem>>, %arg2: memref<1x1xf32, #tpu.memory_space<vmem>>) attributes {dimension_semantics = [], scalar_prefetch = 0 : i64, scratch_operands = 0 : i64, tpu.core_type = #tpu.core_type<tc>} {
    %cst = arith.constant 0.000000e+00 : f32
    %0 = vector.broadcast %cst : f32 to vector<1x128xf32>
    %c0 = arith.constant 0 : index
    %c0_0 = arith.constant 0 : index
    %1 = vector.load %arg0[%c0, %c0_0] : memref<16x128xf32, #tpu.memory_space<vmem>>, vector<16x128xf32>
    %c0_1 = arith.constant 0 : index
    %c0_2 = arith.constant 0 : index
    %2 = vector.load %arg1[%c0_1, %c0_2] : memref<16x128xf32, #tpu.memory_space<vmem>>, vector<16x128xf32>
    %cst_3 = arith.constant 2.550000e+02 : f32
    %3 = vector.broadcast %cst_3 : f32 to vector<16x128xf32>
    %4 = arith.cmpf one, %2, %3 : vector<16x128xf32>
    %cst_4 = arith.constant 0.000000e+00 : f32
    %5 = vector.broadcast %cst_4 : f32 to vector<16x128xf32>
    %6 = arith.select %4, %2, %5 : vector<16x128xi1>, vector<16x128xf32>
    %cst_5 = arith.constant 0.000000e+00 : f32
    %7 = vector.broadcast %cst_5 : f32 to vector<16x128xf32>
    %8 = arith.maximumf %1, %7 : vector<16x128xf32>
    %9 = arith.mulf %1, %6 : vector<16x128xf32>
    %10 = arith.subf %8, %9 : vector<16x128xf32>
    %11 = math.absf %1 : vector<16x128xf32>
    %cst_6 = arith.constant 0.000000e+00 : f32
    %12 = vector.broadcast %cst_6 : f32 to vector<16x128xf32>
    %13 = arith.subf %12, %11 : vector<16x128xf32>
    %14 = math.exp %13 : vector<16x128xf32>
    %15 = math.log1p %14 : vector<16x128xf32>
    %16 = arith.addf %10, %15 : vector<16x128xf32>
    %cst_7 = arith.constant 0.000000e+00 : f32
    %17 = vector.broadcast %cst_7 : f32 to vector<16x128xf32>
    %18 = arith.select %4, %16, %17 : vector<16x128xi1>, vector<16x128xf32>
    %19 = arith.extui %4 : vector<16x128xi1> to vector<16x128xi32>
    %20 = arith.sitofp %19 : vector<16x128xi32> to vector<16x128xf32>
    %cst_8 = arith.constant dense<0.000000e+00> : vector<128xf32>
    %21 = vector.multi_reduction <add>, %18, %cst_8 [0] : vector<16x128xf32> to vector<128xf32>
    %22 = vector.shape_cast %21 : vector<128xf32> to vector<1x128xf32>
    %23 = arith.addf %0, %22 : vector<1x128xf32>
    %cst_9 = arith.constant dense<0.000000e+00> : vector<128xf32>
    %24 = vector.multi_reduction <add>, %20, %cst_9 [0] : vector<16x128xf32> to vector<128xf32>
    %25 = vector.shape_cast %24 : vector<128xf32> to vector<1x128xf32>
    %26 = arith.addf %0, %25 : vector<1x128xf32>
    %cst_10 = arith.constant dense<0.000000e+00> : vector<1xf32>
    %27 = vector.multi_reduction <add>, %23, %cst_10 [1] : vector<1x128xf32> to vector<1xf32>
    %28 = vector.shape_cast %27 : vector<1xf32> to vector<1x1xf32>
    %cst_11 = arith.constant dense<0.000000e+00> : vector<1xf32>
    %29 = vector.multi_reduction <add>, %26, %cst_11 [1] : vector<1x128xf32> to vector<1xf32>
    %30 = vector.shape_cast %29 : vector<1xf32> to vector<1x1xf32>
    %31 = arith.divf %28, %30 : vector<1x1xf32>
    %cst_12 = arith.constant 0.000000e+00 : f32
    %32 = vector.broadcast %cst_12 : f32 to vector<1x1xf32>
    %33 = arith.subf %32, %31 : vector<1x1xf32>
    %34 = math.exp %33 : vector<1x1xf32>
    %cst_13 = arith.constant 1.000000e+00 : f32
    %35 = vector.broadcast %cst_13 : f32 to vector<1x1xf32>
    %36 = arith.subf %35, %34 : vector<1x1xf32>
    %37 = arith.mulf %36, %36 : vector<1x1xf32>
    %cst_14 = arith.constant 0.000000e+00 : f32
    %38 = vector.broadcast %cst_14 : f32 to vector<1x1xf32>
    %39 = arith.subf %38, %37 : vector<1x1xf32>
    %cst_15 = arith.constant 2.500000e-01 : f32
    %40 = vector.broadcast %cst_15 : f32 to vector<1x1xf32>
    %41 = arith.mulf %39, %40 : vector<1x1xf32>
    %42 = arith.mulf %41, %33 : vector<1x1xf32>
    %c0_16 = arith.constant 0 : index
    %c0_17 = arith.constant 0 : index
    %43 = vector.load %arg2[%c0_16, %c0_17] : memref<1x1xf32, #tpu.memory_space<vmem>>, vector<1x1xf32>
    tpu.vector_store %arg2[%c0_16, %c0_17], %42 {strides = array<i32>} : memref<1x1xf32, #tpu.memory_space<vmem>>, vector<1x1xf32>,
    return
  }
}

</mosaic_0001>

<llo_original>
// kernel: tpu_custom_call.1
$region0: #{tpu_custom_call.1}
  #allocation0 [shape = 'u32[]', space=smem, size = 0x4, offset = 0x4, fixed_abs, tag = 'smem constant byte address 0x4 - core index']
  #allocation1 [shape = 'u32[144,128]{1,0:T(1,128)}', space=vmem, size = 0x12000, scoped, tag = 'internal scratch']
  %s0 = inlined_call_operand.hbm [shape: f32[16,128], index: 0, kind: input, shape index: {}]
  %s1 = inlined_call_operand.hbm [shape: f32[16,128], index: 1, kind: input, shape index: {}]
  %s2 = inlined_call_operand.hbm [shape: f32[1,1], index: 2, kind: output, shape index: {}]
  %s3 = sld [smem:[#allocation0]]
  $region26: #{tpu_custom_call.1} parent=0
    _
  %s5 = ssub.s32 1, %s3
  %s6 = scalar_select 0, %s5, %s3
  $region1: #{tpu_custom_call.1} parent=0
    #allocation2 [shape = 'u8[8192]{0}', space=vmem, size = 0x2000, scoped, tag = 'input window, operand 0, single buffered']
    #allocation3 [shape = 's32[1]{0}', space=sflag, size = 0x4, scoped, tag = 'scoped memory for tpu_custom_call.1']
    #allocation4 [shape = 's32[1]{0}', space=sflag, size = 0x4, scoped, tag = 'scoped memory for tpu_custom_call.1']
    #allocation5 [shape = 'u8[8192]{0}', space=vmem, size = 0x2000, scoped, tag = 'input window, operand 1, single buffered']
    #allocation6 [shape = 's32[1]{0}', space=sflag, size = 0x4, scoped, tag = 'scoped memory for tpu_custom_call.1']
    #allocation7 [shape = 'u8[512]{0}', space=vmem, size = 0x400, scoped, tag = 'output window, operand 0, single buffered']
    %7 = vsyncpa [#allocation3], 0
    %8 = vsyncpa [#allocation6], 0
    %9 = vsyncpa [#allocation4], 0
    // Predicated region
    $region2: #{tpu_custom_call.1} parent=1 // pred_check
      _
    $region3: #{tpu_custom_call.1} parent=1 // pred_check_branch
      %11 = sbr.rel (0) target = $region5
    $region4: #{tpu_custom_call.1} parent=1 // pred_region
      %s13 = ssub.s32 256, 256
      %14 = vsyncadd [#allocation3], %s13
      %s15 = sshll.u32 [#allocation2], 4
      %s16 = int_to_ptr.vmem [resolvable:$true] %s15
      %21 = dma.hbm_to_vmem [thread:$0]  %s0, 256, %s16, [#allocation3], 128, 128, 8
    $region5: #{tpu_custom_call.1} parent=1 // pred_fallthru
      _
    // Predicated region
    $region6: #{tpu_custom_call.1} parent=1 // pred_check
      _
    $region7: #{tpu_custom_call.1} parent=1 // pred_check_branch
      %23 = sbr.rel (0) target = $region9
    $region8: #{tpu_custom_call.1} parent=1 // pred_region
      %s25 = ssub.s32 256, 256
      %26 = vsyncadd [#allocation6], %s25
      %s27 = sshll.u32 [#allocation5], 4
      %s28 = int_to_ptr.vmem [resolvable:$true] %s27
      %33 = dma.hbm_to_vmem [thread:$0]  %s1, 256, %s28, [#allocation6], 128, 128, 8
    $region9: #{tpu_custom_call.1} parent=1 // pred_fallthru
      _
    // Predicated region
    $region10: #{tpu_custom_call.1} parent=1 // pred_check
      _
    $region11: #{tpu_custom_call.1} parent=1 // pred_check_branch
      %35 = sbr.rel (0) target = $region13
    $region12: #{tpu_custom_call.1} parent=1 // pred_region
      %36 = dma.done [#allocation3], 256
    $region13: #{tpu_custom_call.1} parent=1 // pred_fallthru
      _
    // Predicated region
    $region14: #{tpu_custom_call.1} parent=1 // pred_check
      _
    $region15: #{tpu_custom_call.1} parent=1 // pred_check_branch
      %38 = sbr.rel (0) target = $region17
    $region16: #{tpu_custom_call.1} parent=1 // pred_region
      %39 = dma.done [#allocation6], 256
    $region17: #{tpu_custom_call.1} parent=1 // pred_fallthru
      _
    %v40 = vld [vmem:[#allocation2] sm:$0xff]
    %v41 = vld [vmem:[#allocation2 + $0x8] sm:$0xff]
    %v42 = vld [vmem:[#allocation5] sm:$0xff]
    %v43 = vld [vmem:[#allocation5 + $0x8] sm:$0xff]
    %vm44 = vcmp.ne.f32.partialorder %v42, 255.0
    %vm45 = vcmp.ne.f32.partialorder %v43, 255.0
    %v46 = vsel %vm44, %v42, 0.0
    %v47 = vsel %vm45, %v43, 0.0
    %v48 = vmax.f32 %v40, 0.0
    %v49 = vmax.f32 %v41, 0.0
    %v50 = vmul.f32 %v40, %v46
    %v51 = vmul.f32 %v41, %v47
    %v52 = vsub.f32 %v48, %v50
    %v53 = vsub.f32 %v49, %v51
    %v54 = vand.u32 2147483647, %v40
    %v55 = vand.u32 2147483647, %v41
    %v56 = vsub.f32 0.0, %v54
    %v57 = vsub.f32 0.0, %v55
    %v58 = vmul.f32 %v56, 1.442695
    %v59 = vpow.pop %v58
    %v60 = vmul.f32 %v57, 1.442695
    %v61 = vpow.pop %v60
    %v62 = vadd.f32 %v59, 1.0
    %v63 = vlog2.pop %v62
    %v64 = vmul.f32 %v63, 0.6931472
    %v65 = vmul.f32 -0.5, %v59
    %v66 = vadd.f32 %v65, 1.0
    %v67 = vmul.f32 %v66, %v59
    %v68 = vand.u32 2147483647, %v59
    %vm69 = vcmp.lt.f32.partialorder %v68, 0.0004427343
    %v70 = vsel %vm69, %v67, %v64
    %v71 = vadd.f32 %v61, 1.0
    %v72 = vlog2.pop %v71
    %v73 = vmul.f32 %v72, 0.6931472
    %v74 = vmul.f32 -0.5, %v61
    %v75 = vadd.f32 %v74, 1.0
    %v76 = vmul.f32 %v75, %v61
    %v77 = vand.u32 2147483647, %v61
    %vm78 = vcmp.lt.f32.partialorder %v77, 0.0004427343
    %v79 = vsel %vm78, %v76, %v73
    %v80 = vadd.f32 %v52, %v70
    %v81 = vadd.f32 %v53, %v79
    %v82 = vsel %vm44, %v80, 0.0
    %v83 = vsel %vm45, %v81, 0.0
    %v84 = vsel %vm44, 1, 0
    %v85 = vsel %vm45, 1, 0
    %v86 = vcvt.s32.f32 %v84
    %v87 = vcvt.s32.f32 %v85
    %v88 = vadd.f32 %v82, %v83
    %v89 = vrot.slane %v88, 4
    %v90 = vadd.f32 %v88, %v89
    %v91 = vrot.slane %v90, 2
    %v92 = vadd.f32 %v90, %v91
    %v93 = vrot.slane %v92, 1
    %v94 = vadd.f32 %v92, %v93
    %v95 = vadd.f32 %v94, 0.0
    %v96 = vadd.f32 %v86, %v87
    %v97 = vrot.slane %v96, 4
    %v98 = vadd.f32 %v96, %v97
    %v99 = vrot.slane %v98, 2
    %v100 = vadd.f32 %v98, %v99
    %v101 = vrot.slane %v100, 1
    %v102 = vadd.f32 %v100, %v101
    %v103 = vadd.f32 %v102, 0.0
    %104 = vadd.xlane.f32.xlu0 %v95
    %v105 = vpop.xlane.xlu0 %104
    %106 = vadd.xlane.f32.xlu0 %v103
    %v107 = vpop.xlane.xlu0 %106
    %v108 = vrcp.pop %v107
    %v109 = vmul.f32 %v105, %v108
    %v110 = vsub.f32 0.0, %v109
    %v111 = vmul.f32 %v110, 1.442695
    %v112 = vpow.pop %v111
    %v113 = vsub.f32 1.0, %v112
    %v114 = vmul.f32 %v113, %v113
    %v115 = vsub.f32 0.0, %v114
    %v116 = vmul.f32 %v115, 0.25
    %v117 = vmul.f32 %v116, %v110
    %vm118 = vcmask 0
    %119 = vst.msk [vmem:[#allocation7] sm:$0x1] %vm118, %v117
    // Predicated region
    $region18: #{tpu_custom_call.1} parent=1 // pred_check
      _
    $region19: #{tpu_custom_call.1} parent=1 // pred_check_branch
      %121 = sbr.rel (0) target = $region21
    $region20: #{tpu_custom_call.1} parent=1 // pred_region
      %s123 = ssub.s32 16, 16
      %124 = vsyncadd [#allocation4], %s123
      %s126 = sshll.u32 [#allocation7], 4
      %s127 = int_to_ptr.vmem [resolvable:$true] %s126
      %129 = dma.vmem_to_hbm [thread:$0]  %s127, 16, %s2, [#allocation4]
    $region21: #{tpu_custom_call.1} parent=1 // pred_fallthru
      _
    // Predicated region
    $region22: #{tpu_custom_call.1} parent=1 // pred_check
      _
    $region23: #{tpu_custom_call.1} parent=1 // pred_check_branch
      %131 = sbr.rel (0) target = $region25
    $region24: #{tpu_custom_call.1} parent=1 // pred_region
      %132 = dma.done [#allocation4], 16
    $region25: #{tpu_custom_call.1} parent=1 // pred_fallthru
      _
    %133 = vsyncpa [#allocation3], 1
    %134 = vsyncpa [#allocation6], 1
    %135 = vsyncpa [#allocation4], 1

</llo_original>
